<compile_context>
chip_gen: v6e
topology: v6e:2x2x1
jax: 0.10.0
libtpu: 0.0.40
codegen_flags: <defaults>
</compile_context>

<pallas_src>
import functools

import jax
import jax.numpy as jnp
from jax.experimental import pallas as pl
from jax.experimental.pallas import tpu as pltpu


# ----------------------------- kernels --------------------------------------


def _rbf_kernel_nb(dist_ref, centers_ref, out_ref, *, gamma):
    # dist_ref:    (tile_n, 1)  f32   edges on sublanes
    # centers_ref: (1, bins)    f32   bins on lanes
    # out_ref:     (tile_n, bins)     direct (N, bins) block
    d = dist_ref[...]
    c = centers_ref[...]
    diff = d - c                                   # broadcast -> (tile_n, bins)
    out_ref[...] = jnp.exp((-gamma) * (diff * diff)).astype(out_ref.dtype)


def _rbf_kernel_bn(dist_ref, centers_ref, out_ref, *, gamma):
    # dist_ref:    (1, tile_n)  f32   edges on lanes (fully lane-dense)
    # centers_ref: (bins, 1)    f32   bins on sublanes
    # out_ref:     (bins, tile_n)
    d = dist_ref[...]
    c = centers_ref[...]
    diff = d - c                                   # broadcast -> (bins, tile_n)
    out_ref[...] = jnp.exp((-gamma) * (diff * diff)).astype(out_ref.dtype)


# ----------------------------- tiling ---------------------------------------


def _round_up(x, m):
    return ((x + m - 1) // m) * m


_VMEM_BUDGET_BYTES = 24 * 1024 * 1024   # for the double-buffered blocks
_VMEM_LIMIT_BYTES = 32 * 1024 * 1024    # passed to the compiler (safe on v5e/v6e/v7x)


def _per_edge_buffer_bytes(bins, layout, out_dtype):
    """VMEM bytes per edge across all pipeline buffers (inputs + outputs, x2)."""
    out_isz = jnp.dtype(out_dtype).itemsize
    if layout == "nb":
        dist_b = 128 * 4                              # (tile,1) f32 row, lane-padded
        out_b = _round_up(bins, 128) * out_isz        # (tile,bins) row, lane-padded
    else:
        dist_b = 8 * 4                                # (1,tile) f32, sublane-padded
        pack = max(1, 4 // out_isz)                   # sublane packing (f32:1, bf16:2)
        out_b = _round_up(bins, 8 * pack) * out_isz   # (bins,tile) column
    return 2 * (dist_b + out_b)                       # x2: double buffering


def _choose_tiling(n, bins, tile_n, layout, out_dtype):
    n128 = _round_up(max(int(n), 1), 128)
    per_edge = _per_edge_buffer_bytes(bins, layout, out_dtype)
    vmem_cap = max(128, (_VMEM_BUDGET_BYTES // per_edge) // 128 * 128)
    tile_max = max(128, min(_round_up(int(tile_n), 128), vmem_cap, n128))
    steps = pl.cdiv(n128, tile_max)
    if n128 >= 256:
        steps = max(steps, 2)        # let the parallel axis shard over v7x's 2 TCs
    tile = _round_up(pl.cdiv(n128, steps), 128)   # rebalanced -> bounded pad waste
    return tile, steps, steps * tile


# ----------------------------- wrapper ---------------------------------------


def rbf_expansion(distance, centers, gamma, *, tile_n=32768, layout="nb",
                  out_dtype=jnp.float32):
    """RBF expansion of edge distances.

    distance: (N,) or (N, 1) array.  centers: (bins,).  gamma: python float.
    layout="nb" -> returns (N, bins)  (matches the PyTorch module's forward).
    layout="bn" -> returns (bins, N)  lane-major, no transpose anywhere.
    out_dtype   -> storage dtype of the result (math stays f32 in-kernel).
    """
    if layout not in ("nb", "bn"):
        raise ValueError(f"unknown layout {layout!r}")
    n = int(distance.shape[0])
    bins = int(centers.shape[0])
    out_dtype = jnp.dtype(out_dtype)

    tile, steps, n_pad = _choose_tiling(n, bins, tile_n, layout, out_dtype)

    # Padded tail distances are zero -> exp(-gamma*centers^2) in (0, 1], finite;
    # they are sliced off before returning.
    d = jnp.pad(distance.reshape(-1).astype(jnp.float32), (0, n_pad - n))
    centers_f32 = centers.astype(jnp.float32)

    kernel_fn = _rbf_kernel_nb if layout == "nb" else _rbf_kernel_bn
    kernel = functools.partial(kernel_fn, gamma=float(gamma))

    cost = pl.CostEstimate(
        flops=3 * n_pad * bins,
        transcendentals=n_pad * bins,
        bytes_accessed=4 * n_pad + out_dtype.itemsize * n_pad * bins + 4 * bins,
    )
    params = pltpu.CompilerParams(
        dimension_semantics=("parallel",),
        vmem_limit_bytes=_VMEM_LIMIT_BYTES,
    )

    if layout == "nb":
        out = pl.pallas_call(
            kernel,
            out_shape=jax.ShapeDtypeStruct((n_pad, bins), out_dtype),
            grid_spec=pltpu.PrefetchScalarGridSpec(
                num_scalar_prefetch=0,
                grid=(steps,),
                in_specs=[
                    pl.BlockSpec((tile, 1), lambda i: (i, 0)),     # distances
                    pl.BlockSpec((1, bins), lambda i: (0, 0)),     # centers (resident)
                ],
                out_specs=pl.BlockSpec((tile, bins), lambda i: (i, 0)),
            ),
            compiler_params=params,
            cost_estimate=cost,
        )(d.reshape(n_pad, 1), centers_f32.reshape(1, bins))
        return out[:n, :]                     # (N, bins) — PyTorch semantics

    out = pl.pallas_call(
        kernel,
        out_shape=jax.ShapeDtypeStruct((bins, n_pad), out_dtype),
        grid_spec=pltpu.PrefetchScalarGridSpec(
            num_scalar_prefetch=0,
            grid=(steps,),
            in_specs=[
                pl.BlockSpec((1, tile), lambda i: (0, i)),         # distances
                pl.BlockSpec((bins, 1), lambda i: (0, 0)),         # centers (resident)
            ],
            out_specs=pl.BlockSpec((bins, tile), lambda i: (0, i)),
        ),
        compiler_params=params,
        cost_estimate=cost,
    )(d.reshape(1, n_pad), centers_f32.reshape(bins, 1))
    return out[:, :n]                         # (bins, N) lane-major


def make_rbf_params(vmin=0.0, vmax=8.0, bins=40, lengthscale=None):
    # Deterministic buffer/parameter construction matching the PyTorch __init__.
    # NOTE: gamma = 1/lengthscale in the default branch but 1/lengthscale**2 when
    # a lengthscale is supplied -- dimensionally inconsistent, but it faithfully
    # mirrors the ALIGNN reference code.
    centers = jnp.linspace(vmin, vmax, bins, dtype=jnp.float32)
    if lengthscale is None:
        lengthscale = float(jnp.mean(jnp.diff(centers)))
        gamma = 1.0 / lengthscale
    else:
        gamma = 1.0 / (lengthscale ** 2)
    return centers, gamma


if __name__ == "__main__":
    vmin, vmax, bins = 0.0, 8.0, 40
    centers, gamma = make_rbf_params(vmin, vmax, bins)

    key = jax.random.PRNGKey(0)
    k0, k1 = jax.random.split(key)

    # Small synthetic input: N deliberately NOT a multiple of 8/128 to exercise
    # the padding + slice path.
    n_edges = 100
    distance = jax.random.uniform(
        k0, (n_edges, 1), dtype=jnp.float32, minval=vmin, maxval=vmax
    )
    ref = jnp.exp(-gamma * (distance - centers.reshape(1, bins)) ** 2)

    # 1) Default path: direct (N, bins) write, f32 (PyTorch semantics, no transpose).
    out = jax.block_until_ready(rbf_expansion(distance, centers, gamma))
    assert out.shape == (n_edges, bins)
    assert jnp.allclose(out, ref, atol=1e-5, rtol=1e-5)

    # 2) Multi-step grid path (>=2 steps exercises the parallel axis / rebalanced tile).
    n2 = 1000
    d2 = jax.random.uniform(k1, (n2, 1), dtype=jnp.float32, minval=vmin, maxval=vmax)
    ref2 = jnp.exp(-gamma * (d2 - centers.reshape(1, bins)) ** 2)
    out2 = jax.block_until_ready(rbf_expansion(d2, centers, gamma))
    assert out2.shape == (n2, bins)
    assert jnp.allclose(out2, ref2, atol=1e-5, rtol=1e-5)

    # 3) Lane-major (bins, N) path for layout-aware consumers (no transpose anywhere).
    out_bn = jax.block_until_ready(
        rbf_expansion(distance, centers, gamma, layout="bn")
    )
    assert out_bn.shape == (bins, n_edges)
    assert jnp.allclose(out_bn.T, ref, atol=1e-5, rtol=1e-5)

    # 4) Optional bf16 output (halves the HBM-write bound traffic; math stays f32).
    out_bf16 = jax.block_until_ready(
        rbf_expansion(distance, centers, gamma, out_dtype=jnp.bfloat16)
    )
    assert out_bf16.dtype == jnp.bfloat16
    assert jnp.allclose(out_bf16.astype(jnp.float32), ref, atol=1e-2, rtol=1e-2)

    print("KERNEL_OK")
</pallas_src>

<mosaic_0001>
module attributes {stable_mosaic.version = 11 : i64} {
  func.func @_rbf_kernel_nb(%arg0: i32, %arg1: memref<128x1xf32, #tpu.memory_space<vmem>>, %arg2: memref<1x40xf32, #tpu.memory_space<vmem>>, %arg3: memref<128x40xf32, #tpu.memory_space<vmem>>) attributes {dimension_semantics = [#tpu.dimension_semantics<parallel>], iteration_bounds = array<i64: 1>, scalar_prefetch = 0 : i64, scratch_operands = 0 : i64, tpu.core_type = #tpu.core_type<tc>, window_params = [{transform_indices = @transform_0, window_bounds = array<i64: 128, 1>}, {pipeline_mode = #tpu.pipeline_mode<synchronous>, transform_indices = @transform_1, window_bounds = array<i64: 1, 40>}, {transform_indices = @transform_2, window_bounds = array<i64: 128, 40>}]} {
    %c0 = arith.constant 0 : index
    %c0_0 = arith.constant 0 : index
    %0 = vector.load %arg1[%c0, %c0_0] : memref<128x1xf32, #tpu.memory_space<vmem>>, vector<128x1xf32>
    %c0_1 = arith.constant 0 : index
    %c0_2 = arith.constant 0 : index
    %1 = vector.load %arg2[%c0_1, %c0_2] : memref<1x40xf32, #tpu.memory_space<vmem>>, vector<1x40xf32>
    %2 = vector.broadcast %0 : vector<128x1xf32> to vector<128x40xf32>
    %3 = vector.broadcast %1 : vector<1x40xf32> to vector<128x40xf32>
    %4 = arith.subf %2, %3 : vector<128x40xf32>
    %5 = arith.mulf %4, %4 : vector<128x40xf32>
    %cst = arith.constant -4.875000e+00 : f32
    %6 = vector.broadcast %cst : f32 to vector<128x40xf32>
    %7 = arith.mulf %6, %5 : vector<128x40xf32>
    %8 = math.exp %7 : vector<128x40xf32>
    %c0_3 = arith.constant 0 : index
    %c0_4 = arith.constant 0 : index
    %9 = vector.load %arg3[%c0_3, %c0_4] : memref<128x40xf32, #tpu.memory_space<vmem>>, vector<128x40xf32>
    tpu.vector_store %arg3[%c0_3, %c0_4], %8 {strides = array<i32>} : memref<128x40xf32, #tpu.memory_space<vmem>>, vector<128x40xf32>,
    return
  }
  func.func @transform_0(%arg0: i32) -> (i32, i32) {
    %c0_i32 = arith.constant 0 : i32
    %c0_i32_0 = arith.constant 0 : i32
    return %arg0, %c0_i32 : i32, i32
  }
  func.func @transform_1(%arg0: i32) -> (i32, i32) {
    %c0_i32 = arith.constant 0 : i32
    %c0_i32_0 = arith.constant 0 : i32
    %c0_i32_1 = arith.constant 0 : i32
    return %c0_i32, %c0_i32_0 : i32, i32
  }
  func.func @transform_2(%arg0: i32) -> (i32, i32) {
    %c0_i32 = arith.constant 0 : i32
    %c0_i32_0 = arith.constant 0 : i32
    return %arg0, %c0_i32 : i32, i32
  }
}

</mosaic_0001>

<llo_original>
// kernel: tpu_custom_call.1
$region0: #{tpu_custom_call.1}
  #allocation0 [shape = 'u32[]', space=smem, size = 0x4, offset = 0x4, fixed_abs, tag = 'smem constant byte address 0x4 - core index']
  #allocation1 [shape = 'u32[144,128]{1,0:T(1,128)}', space=vmem, size = 0x12000, scoped, tag = 'internal scratch']
  %s0 = inlined_call_operand.vmem [shape: f32[128,1], index: 0, kind: input, shape index: {}]
  %s1 = inlined_call_operand.vmem [shape: f32[1,40], index: 1, kind: input, shape index: {}]
  %s2 = inlined_call_operand.vmem [shape: f32[128,40], index: 2, kind: output, shape index: {}]
  %s3 = sld [smem:[#allocation0]]
  $region18: #{tpu_custom_call.1} parent=0
    _
  %s5 = ssub.s32 1, %s3
  %s6 = scalar_select 0, %s5, %s3
  // Predicated region
  $region2: #{tpu_custom_call.1} parent=0 // pred_check
    _
  $region3: #{tpu_custom_call.1} parent=0 // pred_check_branch
    %8 = sbr.rel (0) target = $region5
  $region4: #{tpu_custom_call.1} parent=0 // pred_region
    _
  $region5: #{tpu_custom_call.1} parent=0 // pred_fallthru
    _
  // Predicated region
  $region6: #{tpu_custom_call.1} parent=0 // pred_check
    _
  $region7: #{tpu_custom_call.1} parent=0 // pred_check_branch
    %10 = sbr.rel (0) target = $region9
  $region8: #{tpu_custom_call.1} parent=0 // pred_region
    _
  $region9: #{tpu_custom_call.1} parent=0 // pred_fallthru
    _
  %v11 = vld [vmem:[%s0] sm:$0xff]
  %v12 = vld [vmem:[%s0 + $0x8] sm:$0xff]
  %v13 = vld [vmem:[%s0 + $0x10] sm:$0xff]
  %v14 = vld [vmem:[%s0 + $0x18] sm:$0xff]
  %v15 = vld [vmem:[%s0 + $0x20] sm:$0xff]
  %v16 = vld [vmem:[%s0 + $0x28] sm:$0xff]
  %v17 = vld [vmem:[%s0 + $0x30] sm:$0xff]
  %v18 = vld [vmem:[%s0 + $0x38] sm:$0xff]
  %v19 = vld [vmem:[%s0 + $0x40] sm:$0xff]
  %v20 = vld [vmem:[%s0 + $0x48] sm:$0xff]
  %v21 = vld [vmem:[%s0 + $0x50] sm:$0xff]
  %v22 = vld [vmem:[%s0 + $0x58] sm:$0xff]
  %v23 = vld [vmem:[%s0 + $0x60] sm:$0xff]
  %v24 = vld [vmem:[%s0 + $0x68] sm:$0xff]
  %v25 = vld [vmem:[%s0 + $0x70] sm:$0xff]
  %v26 = vld [vmem:[%s0 + $0x78] sm:$0xff]
  %v27 = vld [vmem:[%s1] sm:$0x1]
  %29 = vset.pattern.permute.xlu0 0
  %30 = vperm.xlu0 %29, %v11
  %v31 = vpop.permute.xlu0 %30
  %34 = vset.pattern.permute.xlu0 0
  %35 = vperm.xlu0 %34, %v12
  %v36 = vpop.permute.xlu0 %35
  %39 = vset.pattern.permute.xlu0 0
  %40 = vperm.xlu0 %39, %v13
  %v41 = vpop.permute.xlu0 %40
  %44 = vset.pattern.permute.xlu0 0
  %45 = vperm.xlu0 %44, %v14
  %v46 = vpop.permute.xlu0 %45
  %49 = vset.pattern.permute.xlu0 0
  %50 = vperm.xlu0 %49, %v15
  %v51 = vpop.permute.xlu0 %50
  %54 = vset.pattern.permute.xlu0 0
  %55 = vperm.xlu0 %54, %v16
  %v56 = vpop.permute.xlu0 %55
  %59 = vset.pattern.permute.xlu0 0
  %60 = vperm.xlu0 %59, %v17
  %v61 = vpop.permute.xlu0 %60
  %64 = vset.pattern.permute.xlu0 0
  %65 = vperm.xlu0 %64, %v18
  %v66 = vpop.permute.xlu0 %65
  %69 = vset.pattern.permute.xlu0 0
  %70 = vperm.xlu0 %69, %v19
  %v71 = vpop.permute.xlu0 %70
  %74 = vset.pattern.permute.xlu0 0
  %75 = vperm.xlu0 %74, %v20
  %v76 = vpop.permute.xlu0 %75
  %79 = vset.pattern.permute.xlu0 0
  %80 = vperm.xlu0 %79, %v21
  %v81 = vpop.permute.xlu0 %80
  %84 = vset.pattern.permute.xlu0 0
  %85 = vperm.xlu0 %84, %v22
  %v86 = vpop.permute.xlu0 %85
  %89 = vset.pattern.permute.xlu0 0
  %90 = vperm.xlu0 %89, %v23
  %v91 = vpop.permute.xlu0 %90
  %94 = vset.pattern.permute.xlu0 0
  %95 = vperm.xlu0 %94, %v24
  %v96 = vpop.permute.xlu0 %95
  %99 = vset.pattern.permute.xlu0 0
  %100 = vperm.xlu0 %99, %v25
  %v101 = vpop.permute.xlu0 %100
  %104 = vset.pattern.permute.xlu0 0
  %105 = vperm.xlu0 %104, %v26
  %v106 = vpop.permute.xlu0 %105
  %v109 = vlaneseq
  %v110 = vshrl.u32 %v109, 7
  %v111 = vsub.s32 0, %v110
  %v112 = vrot.slane %v27, %v111
  %v114 = vsub.f32 %v31, %v112
  %v115 = vsub.f32 %v36, %v112
  %v116 = vsub.f32 %v41, %v112
  %v117 = vsub.f32 %v46, %v112
  %v118 = vsub.f32 %v51, %v112
  %v119 = vsub.f32 %v56, %v112
  %v120 = vsub.f32 %v61, %v112
  %v121 = vsub.f32 %v66, %v112
  %v122 = vsub.f32 %v71, %v112
  %v123 = vsub.f32 %v76, %v112
  %v124 = vsub.f32 %v81, %v112
  %v125 = vsub.f32 %v86, %v112
  %v126 = vsub.f32 %v91, %v112
  %v127 = vsub.f32 %v96, %v112
  %v128 = vsub.f32 %v101, %v112
  %v129 = vsub.f32 %v106, %v112
  %v130 = vmul.f32 %v114, %v114
  %v131 = vmul.f32 %v115, %v115
  %v132 = vmul.f32 %v116, %v116
  %v133 = vmul.f32 %v117, %v117
  %v134 = vmul.f32 %v118, %v118
  %v135 = vmul.f32 %v119, %v119
  %v136 = vmul.f32 %v120, %v120
  %v137 = vmul.f32 %v121, %v121
  %v138 = vmul.f32 %v122, %v122
  %v139 = vmul.f32 %v123, %v123
  %v140 = vmul.f32 %v124, %v124
  %v141 = vmul.f32 %v125, %v125
  %v142 = vmul.f32 %v126, %v126
  %v143 = vmul.f32 %v127, %v127
  %v144 = vmul.f32 %v128, %v128
  %v145 = vmul.f32 %v129, %v129
  %v146 = vmul.f32 %v130, -4.875
  %v147 = vmul.f32 %v131, -4.875
  %v148 = vmul.f32 %v132, -4.875
  %v149 = vmul.f32 %v133, -4.875
  %v150 = vmul.f32 %v134, -4.875
  %v151 = vmul.f32 %v135, -4.875
  %v152 = vmul.f32 %v136, -4.875
  %v153 = vmul.f32 %v137, -4.875
  %v154 = vmul.f32 %v138, -4.875
  %v155 = vmul.f32 %v139, -4.875
  %v156 = vmul.f32 %v140, -4.875
  %v157 = vmul.f32 %v141, -4.875
  %v158 = vmul.f32 %v142, -4.875
  %v159 = vmul.f32 %v143, -4.875
  %v160 = vmul.f32 %v144, -4.875
  %v161 = vmul.f32 %v145, -4.875
  %v162 = vmul.f32 %v146, 1.442695
  %v163 = vpow.pop %v162
  %v164 = vmul.f32 %v147, 1.442695
  %v165 = vpow.pop %v164
  %v166 = vmul.f32 %v148, 1.442695
  %v167 = vpow.pop %v166
  %v168 = vmul.f32 %v149, 1.442695
  %v169 = vpow.pop %v168
  %v170 = vmul.f32 %v150, 1.442695
  %v171 = vpow.pop %v170
  %v172 = vmul.f32 %v151, 1.442695
  %v173 = vpow.pop %v172
  %v174 = vmul.f32 %v152, 1.442695
  %v175 = vpow.pop %v174
  %v176 = vmul.f32 %v153, 1.442695
  %v177 = vpow.pop %v176
  %v178 = vmul.f32 %v154, 1.442695
  %v179 = vpow.pop %v178
  %v180 = vmul.f32 %v155, 1.442695
  %v181 = vpow.pop %v180
  %v182 = vmul.f32 %v156, 1.442695
  %v183 = vpow.pop %v182
  %v184 = vmul.f32 %v157, 1.442695
  %v185 = vpow.pop %v184
  %v186 = vmul.f32 %v158, 1.442695
  %v187 = vpow.pop %v186
  %v188 = vmul.f32 %v159, 1.442695
  %v189 = vpow.pop %v188
  %v190 = vmul.f32 %v160, 1.442695
  %v191 = vpow.pop %v190
  %v192 = vmul.f32 %v161, 1.442695
  %v193 = vpow.pop %v192
  %vm194 = vcmask 326656
  %195 = vst.msk [vmem:[%s2] sm:$0xff] %vm194, %v163
  %196 = vst.msk [vmem:[%s2 + $0x8] sm:$0xff] %vm194, %v165
  %197 = vst.msk [vmem:[%s2 + $0x10] sm:$0xff] %vm194, %v167
  %198 = vst.msk [vmem:[%s2 + $0x18] sm:$0xff] %vm194, %v169
  %199 = vst.msk [vmem:[%s2 + $0x20] sm:$0xff] %vm194, %v171
  %200 = vst.msk [vmem:[%s2 + $0x28] sm:$0xff] %vm194, %v173
  %201 = vst.msk [vmem:[%s2 + $0x30] sm:$0xff] %vm194, %v175
  %202 = vst.msk [vmem:[%s2 + $0x38] sm:$0xff] %vm194, %v177
  %203 = vst.msk [vmem:[%s2 + $0x40] sm:$0xff] %vm194, %v179
  %204 = vst.msk [vmem:[%s2 + $0x48] sm:$0xff] %vm194, %v181
  %205 = vst.msk [vmem:[%s2 + $0x50] sm:$0xff] %vm194, %v183
  %206 = vst.msk [vmem:[%s2 + $0x58] sm:$0xff] %vm194, %v185
  %207 = vst.msk [vmem:[%s2 + $0x60] sm:$0xff] %vm194, %v187
  %208 = vst.msk [vmem:[%s2 + $0x68] sm:$0xff] %vm194, %v189
  %209 = vst.msk [vmem:[%s2 + $0x70] sm:$0xff] %vm194, %v191
  %210 = vst.msk [vmem:[%s2 + $0x78] sm:$0xff] %vm194, %v193
  // Predicated region
  $region10: #{tpu_custom_call.1} parent=0 // pred_check
    _
  $region11: #{tpu_custom_call.1} parent=0 // pred_check_branch
    %212 = sbr.rel (0) target = $region13
  $region12: #{tpu_custom_call.1} parent=0 // pred_region
    _
  $region13: #{tpu_custom_call.1} parent=0 // pred_fallthru
    _
  // Predicated region
  $region14: #{tpu_custom_call.1} parent=0 // pred_check
    _
  $region15: #{tpu_custom_call.1} parent=0 // pred_check_branch
    %214 = sbr.rel (0) target = $region17
  $region16: #{tpu_custom_call.1} parent=0 // pred_region
    _
  $region17: #{tpu_custom_call.1} parent=0 // pred_fallthru
    _

</llo_original>
